<compile_context>
chip_gen: v5e
topology: v5e:2x2
jax: 0.10.0
libtpu: 0.0.40
codegen_flags: <defaults>
</compile_context>

<pallas_src>
import functools

import numpy as np
import jax
import jax.numpy as jnp
from jax.experimental import pallas as pl
from jax.experimental.pallas import tpu as pltpu


SAMPLES_PER_ROW = 8                       # batch samples packed per output row
FEAT_SLOT = 16                            # lanes reserved per sample (latent_dim <= 16)
LANES = SAMPLES_PER_ROW * FEAT_SLOT       # = 128


def _round_up(x, m):
    return ((x + m - 1) // m) * m


def _cdiv(a, b):
    return -(-a // b)


# -----------------------------------------------------------------------------
# Codebook construction (pure NumPy, mirrors BCHCode.__init__).
# -----------------------------------------------------------------------------
def _bch_generator_matrix(latent_dim, num_classes):
    assert latent_dim == 15, "demo restricted to BCH codes of length 15"
    valid_k = [1, 5, 7, 11]                        # message lengths with a BCH(15,k)
    k_min = int(np.ceil(np.log2(num_classes)))
    k = next(kk for kk in valid_k if kk >= k_min)  # smallest valid k >= k_min
    gen_polys = {                                  # coefficients, highest degree first
        1:  [1] * 15,                              # (x^15+1)/(x+1)
        5:  [1, 0, 1, 0, 0, 1, 1, 0, 1, 1, 1],     # x^10+x^8+x^5+x^4+x^2+x+1
        7:  [1, 1, 1, 0, 1, 0, 0, 0, 1],           # x^8+x^7+x^6+x^4+1
        11: [1, 0, 0, 1, 1],                       # x^4+x+1
    }
    g = np.array(gen_polys[k][::-1], dtype=np.int64)   # coeff of x^0 .. x^deg
    n = latent_dim
    G = np.zeros((k, n), dtype=np.int64)
    for i in range(k):                              # row i = x^i * g(x)
        G[i, i:i + g.size] = g
    # Gauss-Jordan over GF(2) -> systematic form [I_k | P].
    for col in range(k):
        pivot = next(r for r in range(col, k) if G[r, col] == 1)
        if pivot != col:
            G[[col, pivot]] = G[[pivot, col]]
        for r in range(k):
            if r != col and G[r, col] == 1:
                G[r] ^= G[col]
    return G.astype(float)


def _enumerate_codewords(gen_mat, num_classes, latent_dim):
    """Identical logic to BCHCode.__enumerate_codewords (LSB-first convention)."""
    k = gen_mat.shape[0]
    codebook = np.zeros((num_classes, latent_dim), dtype=int)
    for class_no in range(num_classes):
        bin_rep = np.array(list(np.binary_repr(class_no).zfill(k))).astype(int)
        bin_rep = np.flip(bin_rep).reshape(1, -1)
        ck = np.sum(bin_rep @ gen_mat, axis=0, dtype=int) % 2
        codebook[class_no, :] = ck
    return codebook


def _rescale_to_unit_length(codebook, latent_dim):
    """Identical logic to BCHCode.__rescale_to_unit_length."""
    bpsk_mod = 2.0 * (codebook - 0.5)
    return bpsk_mod / np.sqrt(latent_dim)


def _build_packed_sign_codebook(codebook_bin):
    """Pack the +-1 (BPSK) codebook into the block layout used by the kernel.

    Returns a (K, 128) f32 array with K = 8 * round_up(num_classes, 16), where
        packed[8*c + j, 16*j + d] = +-1 (sign of codeword c, feature d)
    and every other entry is 0.  Built ONCE at init (NumPy); the unit-sphere
    1/sqrt(latent_dim) scale is applied in f32 after the MXU dot so the +-1/0
    entries remain exact in bf16.
    """
    C, D = codebook_bin.shape
    assert D <= FEAT_SLOT  # TODO(synk): latent_dim 31/63/... needs a different per-row packing factor.
    bpsk = 2.0 * (codebook_bin.astype(np.float32) - 0.5)      # exactly +-1
    c_pad = _round_up(C, FEAT_SLOT)
    K = SAMPLES_PER_ROW * c_pad                               # multiple of 128
    packed = np.zeros((K, LANES), np.float32)
    for j in range(SAMPLES_PER_ROW):
        packed[j:SAMPLES_PER_ROW * C:SAMPLES_PER_ROW,
               FEAT_SLOT * j:FEAT_SLOT * j + D] = bpsk
    return packed


# -----------------------------------------------------------------------------
# Pallas kernel: one batch tile of forward(y) = codebook[y].
#   y_ref : (rows_tile, 8)   int32  -- 8 batch samples per packed row
#   cb_ref: (K, 128)         bf16   -- packed +-1/0 sign codebook (VMEM-resident)
#   o_ref : (rows_tile, 128) f32    -- 8 samples x 16 features per 128-lane row
# -----------------------------------------------------------------------------
def bch_gather_kernel(y_ref, cb_ref, o_ref, *, scale):
    rows = y_ref.shape[0]
    k_dim = cb_ref.shape[0]
    y = y_ref[...]                                               # (rows, 8) int32
    lane = jax.lax.broadcasted_iota(jnp.int32, (rows, k_dim), 1)
    # One-hot over the packed contraction axis k = 8*class + slot: the sample
    # in slot j of a packed row selects k = 8*y + j (out-of-range y -> zero row).
    hit = lane == (y[:, 0:1] * SAMPLES_PER_ROW)
    for j in range(1, SAMPLES_PER_ROW):
        hit = hit | (lane == (y[:, j:j + 1] * SAMPLES_PER_ROW + j))
    onehot = hit.astype(jnp.bfloat16)                            # 0/1 exact in bf16
    acc = jnp.dot(onehot, cb_ref[...], preferred_element_type=jnp.float32)
    o_ref[...] = acc * jnp.float32(scale)                        # single f32 post-dot scale


def bch_code_forward(y, cb_packed, latent_dim, *, max_rows_per_tile=32):
    """Pallas equivalent of BCHCode.forward: returns codebook[y].

    `cb_packed` is the precomputed (K, 128) bf16 packed sign codebook (built
    once at init; padding/packing hoisted out of the per-call path).
    """
    D = latent_dim
    scale = float(np.float32(1.0 / np.sqrt(float(D))))
    y_flat = y.reshape(-1).astype(jnp.int32)
    B = int(y_flat.shape[0])
    K, N = cb_packed.shape                                       # N == 128

    # 8 samples per packed row; tile <= 32 rows (256 samples) so intermediates
    # stay in the 64-vreg file, and cap at half the batch so large batches get
    # >= 2 grid steps (v7x 2-TC split via "parallel").
    n_rows = _cdiv(B, SAMPLES_PER_ROW)
    rows_tile = max(8, min(max_rows_per_tile, _round_up(_cdiv(n_rows, 2), 8)))
    n_rows_pad = _round_up(n_rows, rows_tile)

    y_pad = jnp.zeros((n_rows_pad * SAMPLES_PER_ROW,), jnp.int32).at[:B].set(y_flat)
    y_pad = y_pad.reshape(n_rows_pad, SAMPLES_PER_ROW)

    out = pl.pallas_call(
        functools.partial(bch_gather_kernel, scale=scale),
        out_shape=jax.ShapeDtypeStruct((n_rows_pad, LANES), jnp.float32),
        grid_spec=pltpu.PrefetchScalarGridSpec(
            num_scalar_prefetch=0,
            grid=(n_rows_pad // rows_tile,),
            in_specs=[
                pl.BlockSpec((rows_tile, SAMPLES_PER_ROW), lambda i: (i, 0)),   # labels
                pl.BlockSpec((K, LANES), lambda i: (0, 0)),                     # resident codebook
            ],
            out_specs=pl.BlockSpec((rows_tile, LANES), lambda i: (i, 0)),
        ),
        compiler_params=pltpu.CompilerParams(
            dimension_semantics=("parallel",)),
    )(y_pad, cb_packed)

    # Unpack: (rows, 128) -> (rows*8, 16) is a contiguous reshape; the de-pad
    # slice now touches only 16/15 of the useful bytes (was 128/15).
    out = out.reshape(n_rows_pad * SAMPLES_PER_ROW, FEAT_SLOT)[:B, :D]
    return out.reshape(y.shape + (D,))


if __name__ == "__main__":
    latent_dim = 15          # must be 2^m - 1
    num_classes = 8
    batch = 8

    # Deterministic parameter ("codebook") construction, as in __init__.
    gen_mat = _bch_generator_matrix(latent_dim, num_classes)
    cb_bin = _enumerate_codewords(gen_mat, num_classes, latent_dim)
    cb_euclid = _rescale_to_unit_length(cb_bin, latent_dim).astype(np.float32)
    codebook = jnp.asarray(cb_euclid)                            # (num_classes, latent_dim) f32

    # Packed +-1 sign codebook for the kernel, built once at init (hoisted).
    cb_packed = jnp.asarray(_build_packed_sign_codebook(cb_bin), dtype=jnp.bfloat16)

    # Deterministic inputs.
    key = jax.random.PRNGKey(0)
    y = jax.random.randint(key, (batch,), 0, num_classes, dtype=jnp.int32)

    out = bch_code_forward(y, cb_packed, latent_dim)
    out = jax.block_until_ready(out)

    # Reference check against plain JAX gather of the f32 codebook.
    ref = codebook[y]
    assert out.shape == (batch, latent_dim) and out.dtype == jnp.float32
    np.testing.assert_allclose(np.asarray(out), np.asarray(ref), rtol=0, atol=1e-6)

    print("KERNEL_OK")
</pallas_src>

<mosaic_0001>
module attributes {stable_mosaic.version = 11 : i64} {
  func.func @bch_gather_kernel(%arg0: i32, %arg1: memref<8x8xi32, #tpu.memory_space<vmem>>, %arg2: memref<128x128xbf16, #tpu.memory_space<vmem>>, %arg3: memref<8x128xf32, #tpu.memory_space<vmem>>) attributes {dimension_semantics = [#tpu.dimension_semantics<parallel>], iteration_bounds = array<i64: 1>, scalar_prefetch = 0 : i64, scratch_operands = 0 : i64, tpu.core_type = #tpu.core_type<tc>, window_params = [{transform_indices = @transform_0, window_bounds = array<i64: 8, 8>}, {pipeline_mode = #tpu.pipeline_mode<synchronous>, transform_indices = @transform_1, window_bounds = array<i64: 128, 128>}, {transform_indices = @transform_2, window_bounds = array<i64: 8, 128>}]} {
    %c0 = arith.constant 0 : index
    %c0_0 = arith.constant 0 : index
    %0 = vector.load %arg1[%c0, %c0_0] : memref<8x8xi32, #tpu.memory_space<vmem>>, vector<8x8xi32>
    %1 = tpu.iota {dimensions = array<i32: 1>} : vector<8x128xi32>
    %2 = vector.extract_strided_slice %0 {offsets = [0, 0], sizes = [8, 1], strides = [1, 1]} : vector<8x8xi32> to vector<8x1xi32>
    %c8_i32 = arith.constant 8 : i32
    %3 = vector.broadcast %c8_i32 : i32 to vector<8x1xi32>
    %4 = arith.muli %2, %3 : vector<8x1xi32>
    %5 = vector.broadcast %4 : vector<8x1xi32> to vector<8x128xi32>
    %6 = arith.cmpi eq, %1, %5 : vector<8x128xi32>
    %7 = vector.extract_strided_slice %0 {offsets = [0, 1], sizes = [8, 1], strides = [1, 1]} : vector<8x8xi32> to vector<8x1xi32>
    %c8_i32_1 = arith.constant 8 : i32
    %8 = vector.broadcast %c8_i32_1 : i32 to vector<8x1xi32>
    %9 = arith.muli %7, %8 : vector<8x1xi32>
    %c1_i32 = arith.constant 1 : i32
    %10 = vector.broadcast %c1_i32 : i32 to vector<8x1xi32>
    %11 = arith.addi %9, %10 : vector<8x1xi32>
    %12 = vector.broadcast %11 : vector<8x1xi32> to vector<8x128xi32>
    %13 = arith.cmpi eq, %1, %12 : vector<8x128xi32>
    %14 = arith.ori %6, %13 : vector<8x128xi1>
    %15 = vector.extract_strided_slice %0 {offsets = [0, 2], sizes = [8, 1], strides = [1, 1]} : vector<8x8xi32> to vector<8x1xi32>
    %c8_i32_2 = arith.constant 8 : i32
    %16 = vector.broadcast %c8_i32_2 : i32 to vector<8x1xi32>
    %17 = arith.muli %15, %16 : vector<8x1xi32>
    %c2_i32 = arith.constant 2 : i32
    %18 = vector.broadcast %c2_i32 : i32 to vector<8x1xi32>
    %19 = arith.addi %17, %18 : vector<8x1xi32>
    %20 = vector.broadcast %19 : vector<8x1xi32> to vector<8x128xi32>
    %21 = arith.cmpi eq, %1, %20 : vector<8x128xi32>
    %22 = arith.ori %14, %21 : vector<8x128xi1>
    %23 = vector.extract_strided_slice %0 {offsets = [0, 3], sizes = [8, 1], strides = [1, 1]} : vector<8x8xi32> to vector<8x1xi32>
    %c8_i32_3 = arith.constant 8 : i32
    %24 = vector.broadcast %c8_i32_3 : i32 to vector<8x1xi32>
    %25 = arith.muli %23, %24 : vector<8x1xi32>
    %c3_i32 = arith.constant 3 : i32
    %26 = vector.broadcast %c3_i32 : i32 to vector<8x1xi32>
    %27 = arith.addi %25, %26 : vector<8x1xi32>
    %28 = vector.broadcast %27 : vector<8x1xi32> to vector<8x128xi32>
    %29 = arith.cmpi eq, %1, %28 : vector<8x128xi32>
    %30 = arith.ori %22, %29 : vector<8x128xi1>
    %31 = vector.extract_strided_slice %0 {offsets = [0, 4], sizes = [8, 1], strides = [1, 1]} : vector<8x8xi32> to vector<8x1xi32>
    %c8_i32_4 = arith.constant 8 : i32
    %32 = vector.broadcast %c8_i32_4 : i32 to vector<8x1xi32>
    %33 = arith.muli %31, %32 : vector<8x1xi32>
    %c4_i32 = arith.constant 4 : i32
    %34 = vector.broadcast %c4_i32 : i32 to vector<8x1xi32>
    %35 = arith.addi %33, %34 : vector<8x1xi32>
    %36 = vector.broadcast %35 : vector<8x1xi32> to vector<8x128xi32>
    %37 = arith.cmpi eq, %1, %36 : vector<8x128xi32>
    %38 = arith.ori %30, %37 : vector<8x128xi1>
    %39 = vector.extract_strided_slice %0 {offsets = [0, 5], sizes = [8, 1], strides = [1, 1]} : vector<8x8xi32> to vector<8x1xi32>
    %c8_i32_5 = arith.constant 8 : i32
    %40 = vector.broadcast %c8_i32_5 : i32 to vector<8x1xi32>
    %41 = arith.muli %39, %40 : vector<8x1xi32>
    %c5_i32 = arith.constant 5 : i32
    %42 = vector.broadcast %c5_i32 : i32 to vector<8x1xi32>
    %43 = arith.addi %41, %42 : vector<8x1xi32>
    %44 = vector.broadcast %43 : vector<8x1xi32> to vector<8x128xi32>
    %45 = arith.cmpi eq, %1, %44 : vector<8x128xi32>
    %46 = arith.ori %38, %45 : vector<8x128xi1>
    %47 = vector.extract_strided_slice %0 {offsets = [0, 6], sizes = [8, 1], strides = [1, 1]} : vector<8x8xi32> to vector<8x1xi32>
    %c8_i32_6 = arith.constant 8 : i32
    %48 = vector.broadcast %c8_i32_6 : i32 to vector<8x1xi32>
    %49 = arith.muli %47, %48 : vector<8x1xi32>
    %c6_i32 = arith.constant 6 : i32
    %50 = vector.broadcast %c6_i32 : i32 to vector<8x1xi32>
    %51 = arith.addi %49, %50 : vector<8x1xi32>
    %52 = vector.broadcast %51 : vector<8x1xi32> to vector<8x128xi32>
    %53 = arith.cmpi eq, %1, %52 : vector<8x128xi32>
    %54 = arith.ori %46, %53 : vector<8x128xi1>
    %55 = vector.extract_strided_slice %0 {offsets = [0, 7], sizes = [8, 1], strides = [1, 1]} : vector<8x8xi32> to vector<8x1xi32>
    %c8_i32_7 = arith.constant 8 : i32
    %56 = vector.broadcast %c8_i32_7 : i32 to vector<8x1xi32>
    %57 = arith.muli %55, %56 : vector<8x1xi32>
    %c7_i32 = arith.constant 7 : i32
    %58 = vector.broadcast %c7_i32 : i32 to vector<8x1xi32>
    %59 = arith.addi %57, %58 : vector<8x1xi32>
    %60 = vector.broadcast %59 : vector<8x1xi32> to vector<8x128xi32>
    %61 = arith.cmpi eq, %1, %60 : vector<8x128xi32>
    %62 = arith.ori %54, %61 : vector<8x128xi1>
    %63 = arith.extui %62 : vector<8x128xi1> to vector<8x128xi32>
    %64 = arith.sitofp %63 : vector<8x128xi32> to vector<8x128xf32>
    %65 = arith.truncf %64 : vector<8x128xf32> to vector<8x128xbf16>
    %c0_8 = arith.constant 0 : index
    %c0_9 = arith.constant 0 : index
    %66 = vector.load %arg2[%c0_8, %c0_9] : memref<128x128xbf16, #tpu.memory_space<vmem>>, vector<128x128xbf16>
    %cst = arith.constant dense<0.000000e+00> : vector<8x128xf32>
    %67 = tpu.matmul %65, %66, %cst {dimension_numbers = #tpu.dot_dimension_numbers<[1], [0], [0], [1], [0, 0, 1, 1], [], []>} : vector<8x128xbf16>, vector<128x128xbf16>, vector<8x128xf32> -> vector<8x128xf32>
    %cst_10 = arith.constant 0.258198887 : f32
    %68 = vector.broadcast %cst_10 : f32 to vector<8x128xf32>
    %69 = arith.mulf %67, %68 : vector<8x128xf32>
    %c0_11 = arith.constant 0 : index
    %c0_12 = arith.constant 0 : index
    %70 = vector.load %arg3[%c0_11, %c0_12] : memref<8x128xf32, #tpu.memory_space<vmem>>, vector<8x128xf32>
    tpu.vector_store %arg3[%c0_11, %c0_12], %69 {strides = array<i32>} : memref<8x128xf32, #tpu.memory_space<vmem>>, vector<8x128xf32>,
    return
  }
  func.func @transform_0(%arg0: i32) -> (i32, i32) {
    %c0_i32 = arith.constant 0 : i32
    %c0_i32_0 = arith.constant 0 : i32
    return %arg0, %c0_i32 : i32, i32
  }
  func.func @transform_1(%arg0: i32) -> (i32, i32) {
    %c0_i32 = arith.constant 0 : i32
    %c0_i32_0 = arith.constant 0 : i32
    %c0_i32_1 = arith.constant 0 : i32
    return %c0_i32, %c0_i32_0 : i32, i32
  }
  func.func @transform_2(%arg0: i32) -> (i32, i32) {
    %c0_i32 = arith.constant 0 : i32
    %c0_i32_0 = arith.constant 0 : i32
    return %arg0, %c0_i32 : i32, i32
  }
}

</mosaic_0001>

<llo_original>
// kernel: tpu_custom_call.1
$region0: #{tpu_custom_call.1}
  #allocation0 [shape = 'u32[]', space=smem, size = 0x4, offset = 0x4, fixed_abs, tag = 'smem constant byte address 0x4 - core index']
  #allocation1 [shape = 'u32[72,128]{1,0:T(1,128)}', space=vmem, size = 0x9000, scoped, tag = 'internal scratch']
  %s0 = inlined_call_operand.hbm [shape: s32[8,8], index: 0, kind: input, shape index: {}]
  %s1 = inlined_call_operand.hbm [shape: bf16[128,128], index: 1, kind: input, shape index: {}]
  %s2 = inlined_call_operand.hbm [shape: f32[8,128], index: 2, kind: output, shape index: {}]
  %s3 = sld [smem:[#allocation0]]
  $region26: #{tpu_custom_call.1} parent=0
    _
  %s5 = ssub.s32 1, %s3
  %s6 = scalar_select 0, %s5, %s3
  $region1: #{tpu_custom_call.1} parent=0
    #allocation2 [shape = 'u8[4096]{0}', space=vmem, size = 0x1000, scoped, tag = 'input window, operand 0, single buffered']
    #allocation3 [shape = 's32[1]{0}', space=sflag, size = 0x4, scoped, tag = 'scoped memory for tpu_custom_call.1']
    #allocation4 [shape = 's32[1]{0}', space=sflag, size = 0x4, scoped, tag = 'scoped memory for tpu_custom_call.1']
    #allocation5 [shape = 'u8[32768]{0}', space=vmem, size = 0x8000, scoped, tag = 'input window, operand 1, single buffered']
    #allocation6 [shape = 's32[1]{0}', space=sflag, size = 0x4, scoped, tag = 'scoped memory for tpu_custom_call.1']
    #allocation7 [shape = 'u8[4096]{0}', space=vmem, size = 0x1000, scoped, tag = 'output window, operand 0, single buffered']
    %7 = vsyncpa [#allocation3], 0
    %8 = vsyncpa [#allocation6], 0
    %9 = vsyncpa [#allocation4], 0
    // Predicated region
    $region2: #{tpu_custom_call.1} parent=1 // pred_check
      _
    $region3: #{tpu_custom_call.1} parent=1 // pred_check_branch
      %11 = sbr.rel (0) target = $region5
    $region4: #{tpu_custom_call.1} parent=1 // pred_region
      %13 = vsyncadd [#allocation3], 0
      %s15 = sshll.u32 %s0, 4
      %s16 = int_to_ptr.hbm [resolvable:$true] %s15
      %s17 = sshll.u32 [#allocation2], 4
      %s18 = int_to_ptr.vmem [resolvable:$true] %s17
      %20 = dma.hbm_to_vmem [thread:$0]  %s16, 128, %s18, [#allocation3]
    $region5: #{tpu_custom_call.1} parent=1 // pred_fallthru
      _
    // Predicated region
    $region6: #{tpu_custom_call.1} parent=1 // pred_check
      _
    $region7: #{tpu_custom_call.1} parent=1 // pred_check_branch
      %22 = sbr.rel (0) target = $region9
    $region8: #{tpu_custom_call.1} parent=1 // pred_region
      %24 = vsyncadd [#allocation6], 0
      %s25 = sshll.u32 %s1, 4
      %s26 = int_to_ptr.hbm [resolvable:$true] %s25
      %s27 = sshll.u32 [#allocation5], 4
      %s28 = int_to_ptr.vmem [resolvable:$true] %s27
      %33 = dma.hbm_to_vmem [thread:$0]  %s26, 1024, %s28, [#allocation6], 64, 64, 4
    $region9: #{tpu_custom_call.1} parent=1 // pred_fallthru
      _
    // Predicated region
    $region10: #{tpu_custom_call.1} parent=1 // pred_check
      _
    $region11: #{tpu_custom_call.1} parent=1 // pred_check_branch
      %35 = sbr.rel (0) target = $region13
    $region12: #{tpu_custom_call.1} parent=1 // pred_region
      %37 = dma.done [#allocation3], 128
    $region13: #{tpu_custom_call.1} parent=1 // pred_fallthru
      _
    // Predicated region
    $region14: #{tpu_custom_call.1} parent=1 // pred_check
      _
    $region15: #{tpu_custom_call.1} parent=1 // pred_check_branch
      %39 = sbr.rel (0) target = $region17
    $region16: #{tpu_custom_call.1} parent=1 // pred_region
      %41 = dma.done [#allocation6], 1024
    $region17: #{tpu_custom_call.1} parent=1 // pred_fallthru
      _
    %v42 = vld [vmem:[#allocation2] sm:$0xff]
    %v43 = vlaneseq
    %v44 = vand.u32 %v43, 127
    %v45 = vmul.u32 %v42, 8
    %46 = vset.pattern.permute.xlu0 0
    %47 = vperm.xlu0 %46, %v45
    %v48 = vpop.permute.xlu0 %47
    %vm49 = vcmp.eq.s32.totalorder %v44, %v48
    %v50 = vadd.s32 %v45, 1
    %51 = vset.pattern.permute.xlu0 1
    %52 = vperm.xlu0 %51, %v50
    %v53 = vpop.permute.xlu0 %52
    %vm54 = vcmp.eq.s32.totalorder %v44, %v53
    %vm55 = vmor %vm49, %vm54
    %v56 = vadd.s32 %v45, 2
    %57 = vset.pattern.permute.xlu0 2
    %58 = vperm.xlu0 %57, %v56
    %v59 = vpop.permute.xlu0 %58
    %vm60 = vcmp.eq.s32.totalorder %v44, %v59
    %vm61 = vmor %vm55, %vm60
    %v62 = vadd.s32 %v45, 3
    %63 = vset.pattern.permute.xlu0 3
    %64 = vperm.xlu0 %63, %v62
    %v65 = vpop.permute.xlu0 %64
    %vm66 = vcmp.eq.s32.totalorder %v44, %v65
    %vm67 = vmor %vm61, %vm66
    %v68 = vadd.s32 %v45, 4
    %69 = vset.pattern.permute.xlu0 4
    %70 = vperm.xlu0 %69, %v68
    %v71 = vpop.permute.xlu0 %70
    %vm72 = vcmp.eq.s32.totalorder %v44, %v71
    %vm73 = vmor %vm67, %vm72
    %v74 = vadd.s32 %v45, 5
    %75 = vset.pattern.permute.xlu0 5
    %76 = vperm.xlu0 %75, %v74
    %v77 = vpop.permute.xlu0 %76
    %vm78 = vcmp.eq.s32.totalorder %v44, %v77
    %vm79 = vmor %vm73, %vm78
    %v80 = vadd.s32 %v45, 6
    %81 = vset.pattern.permute.xlu0 6
    %82 = vperm.xlu0 %81, %v80
    %v83 = vpop.permute.xlu0 %82
    %vm84 = vcmp.eq.s32.totalorder %v44, %v83
    %vm85 = vmor %vm79, %vm84
    %v86 = vadd.s32 %v45, 7
    %87 = vset.pattern.permute.xlu0 7
    %88 = vperm.xlu0 %87, %v86
    %v89 = vpop.permute.xlu0 %88
    %vm90 = vcmp.eq.s32.totalorder %v44, %v89
    %vm91 = vmor %vm85, %vm90
    %v92 = vsel %vm91, 1, 0
    %v93 = vcvt.s32.f32 %v92
    %v94 = vpack.c.bf16 %v93, %v93
    %v95 = vld [vmem:[#allocation5] sm:$0xf]
    %v96 = vld [vmem:[#allocation5 + $0x4] sm:$0xf]
    %v97 = vld [vmem:[#allocation5 + $0x8] sm:$0xf]
    %v98 = vld [vmem:[#allocation5 + $0xc] sm:$0xf]
    %v99 = vld [vmem:[#allocation5 + $0x10] sm:$0xf]
    %v100 = vld [vmem:[#allocation5 + $0x14] sm:$0xf]
    %v101 = vld [vmem:[#allocation5 + $0x18] sm:$0xf]
    %v102 = vld [vmem:[#allocation5 + $0x1c] sm:$0xf]
    %v103 = vld [vmem:[#allocation5 + $0x20] sm:$0xf]
    %v104 = vld [vmem:[#allocation5 + $0x24] sm:$0xf]
    %v105 = vld [vmem:[#allocation5 + $0x28] sm:$0xf]
    %v106 = vld [vmem:[#allocation5 + $0x2c] sm:$0xf]
    %v107 = vld [vmem:[#allocation5 + $0x30] sm:$0xf]
    %v108 = vld [vmem:[#allocation5 + $0x34] sm:$0xf]
    %v109 = vld [vmem:[#allocation5 + $0x38] sm:$0xf]
    %v110 = vld [vmem:[#allocation5 + $0x3c] sm:$0xf]
    %v127 = vunpack.c.l.b16 %v95
    %v128 = vunpack.c.l.b16 %v96
    %v129 = vunpack.c.l.b16 %v97
    %v130 = vunpack.c.l.b16 %v98
    %v131 = vunpack.c.l.b16 %v99
    %v132 = vunpack.c.l.b16 %v100
    %v133 = vunpack.c.l.b16 %v101
    %v134 = vunpack.c.l.b16 %v102
    %v135 = vunpack.c.l.b16 %v103
    %v136 = vunpack.c.l.b16 %v104
    %v137 = vunpack.c.l.b16 %v105
    %v138 = vunpack.c.l.b16 %v106
    %v139 = vunpack.c.l.b16 %v107
    %v140 = vunpack.c.l.b16 %v108
    %v141 = vunpack.c.l.b16 %v109
    %v142 = vunpack.c.l.b16 %v110
    %v143 = vpack.c.b16 %v128, %v127
    %v144 = vpack.c.b16 %v130, %v129
    %v145 = vpack.c.b16 %v132, %v131
    %v146 = vpack.c.b16 %v134, %v133
    %v147 = vpack.c.b16 %v136, %v135
    %v148 = vpack.c.b16 %v138, %v137
    %v149 = vpack.c.b16 %v140, %v139
    %v150 = vpack.c.b16 %v142, %v141
    %159 = vmatpush.bf16.msra.mxu0 %v150
    %160 = vmatpush.bf16.msra.mxu0 %v149
    %161 = vmatpush.bf16.msra.mxu0 %v148
    %162 = vmatpush.bf16.msra.mxu0 %v147
    %163 = vmatpush.bf16.msra.mxu0 %v146
    %164 = vmatpush.bf16.msra.mxu0 %v145
    %165 = vmatpush.bf16.msra.mxu0 %v144
    %166 = vmatpush.bf16.msra.mxu0 %v143
    %167 = vmatmul.bf16.gmra.mxu0 %v94
    %v168 = vpop.f32.mrf.mxu0
    %v169 = vadd.f32 0.0, %v168
    %v170 = vpop.f32.mrf.mxu0
    %171 = vdwg.mxu0
    %v172 = vmul.f32 %v169, 0.2581989
    %173 = vst [vmem:[#allocation7] sm:$0xff] %v172
    // Predicated region
    $region18: #{tpu_custom_call.1} parent=1 // pred_check
      _
    $region19: #{tpu_custom_call.1} parent=1 // pred_check_branch
      %175 = sbr.rel (0) target = $region21
    $region20: #{tpu_custom_call.1} parent=1 // pred_region
      %177 = vsyncadd [#allocation4], 0
      %s179 = sshll.u32 [#allocation7], 4
      %s180 = int_to_ptr.vmem [resolvable:$true] %s179
      %s181 = sshll.u32 %s2, 4
      %s182 = int_to_ptr.hbm [resolvable:$true] %s181
      %184 = dma.vmem_to_hbm [thread:$0]  %s180, 128, %s182, [#allocation4]
    $region21: #{tpu_custom_call.1} parent=1 // pred_fallthru
      _
    // Predicated region
    $region22: #{tpu_custom_call.1} parent=1 // pred_check
      _
    $region23: #{tpu_custom_call.1} parent=1 // pred_check_branch
      %186 = sbr.rel (0) target = $region25
    $region24: #{tpu_custom_call.1} parent=1 // pred_region
      %188 = dma.done [#allocation4], 128
    $region25: #{tpu_custom_call.1} parent=1 // pred_fallthru
      _
    %189 = vsyncpa [#allocation3], 1
    %190 = vsyncpa [#allocation6], 1
    %191 = vsyncpa [#allocation4], 1

</llo_original>
